<compile_context>
chip_gen: v6e
topology: v6e:2x2x1
jax: 0.10.0
libtpu: 0.0.40
codegen_flags: <defaults>
</compile_context>

<pallas_src>
import jax
import jax.numpy as jnp
import numpy as np
from jax import lax
from jax.experimental import pallas as pl
from jax.experimental.pallas import tpu as pltpu

BN_EPS = 1e-5


def _round_up(x, m):
    return (x + m - 1) // m * m


# -----------------------------------------------------------------------------
# Shared in-kernel fused activation:
#   act = node @ W_self + sum_d onehot[:, d] * (summed @ W_deg[d])
# bf16 operands, f32 accumulation.  Degrees partition the nodes, so exactly one
# onehot column is non-zero per row and the sum equals the per-degree select of
# the original module.
# -----------------------------------------------------------------------------
def _fused_act(node_ref, summed_ref, onehot_ref, w_self_ref, w_deg_ref, num_deg):
    acc = jnp.dot(node_ref[...].astype(jnp.bfloat16), w_self_ref[...],
                  preferred_element_type=jnp.float32)
    summed_b = summed_ref[...].astype(jnp.bfloat16)
    onehot = onehot_ref[...]
    for d in range(num_deg):                       # static tiny unrolled loop
        acc = acc + onehot[:, d:d + 1] * jnp.dot(
            summed_b, w_deg_ref[d], preferred_element_type=jnp.float32)
    return acc


def _make_small_kernel(num_deg):
    """Small-graph path: one gridless kernel, single-pass BN stats, fully VMEM-resident."""
    def kernel(node_ref, summed_ref, onehot_ref, w_self_ref, w_deg_ref, o_ref):
        acc = _fused_act(node_ref, summed_ref, onehot_ref, w_self_ref, w_deg_ref, num_deg)
        inv_n = 1.0 / acc.shape[0]                     # static N
        s = jnp.sum(acc, axis=0, keepdims=True)        # one pass: sum
        ss = jnp.sum(acc * acc, axis=0, keepdims=True)  #          sum of squares
        mean = s * inv_n
        var = jnp.maximum(ss * inv_n - mean * mean, 0.0)
        o_ref[...] = jnp.maximum((acc - mean) * lax.rsqrt(var + BN_EPS), 0.0)
    return kernel


def _make_stats_kernel(num_deg, n_true):
    """Tiled pass 1: fused matmul -> per-tile partial sum / sumsq only (no act in HBM)."""
    def kernel(node_ref, summed_ref, onehot_ref, w_self_ref, w_deg_ref, part_ref):
        acc = _fused_act(node_ref, summed_ref, onehot_ref, w_self_ref, w_deg_ref, num_deg)
        tm = node_ref.shape[0]
        rows = pl.program_id(0) * tm + lax.broadcasted_iota(jnp.int32, (tm, 1), 0)
        acc = jnp.where(rows < n_true, acc, 0.0)       # mask ragged tail rows
        part_ref[0:1, :] = jnp.sum(acc, axis=0, keepdims=True)
        part_ref[1:2, :] = jnp.sum(acc * acc, axis=0, keepdims=True)
    return kernel


def _make_bn_relu_kernel(num_deg):
    """Tiled pass 2: recompute fused matmul, normalize with precomputed stats, ReLU."""
    def kernel(node_ref, summed_ref, onehot_ref, w_self_ref, w_deg_ref, stats_ref, o_ref):
        acc = _fused_act(node_ref, summed_ref, onehot_ref, w_self_ref, w_deg_ref, num_deg)
        mean = stats_ref[0:1, :]
        inv_std = stats_ref[1:2, :]
        o_ref[...] = jnp.maximum((acc - mean) * inv_std, 0.0)
    return kernel


# -----------------------------------------------------------------------------
# Wrapper
# -----------------------------------------------------------------------------
def graph_degree_conv(node_repr, summed, onehot, w_self, w_deg, *,
                      row_tile=1024, small_cutoff=256):
    """Forward of GraphDegreeConv (batch_normalize=True) -> ReLU output [N, output_size].

    The PyTorch `bias` parameter is intentionally not an input: with
    BatchNorm1d(affine=False) any per-column constant cancels exactly.
    Row i of `summed`/`onehot` must correspond to node i (same alignment assumption
    the original PyTorch module makes when it concatenates degree groups).
    """
    n, node_size = node_repr.shape
    num_deg, temp_size, out_size = w_deg.shape
    w_self_b = w_self.astype(jnp.bfloat16)             # tiny one-time casts
    w_deg_b = w_deg.astype(jnp.bfloat16)

    if n <= small_cutoff:
        vmem = pl.BlockSpec(memory_space=pltpu.MemorySpace.VMEM)
        return pl.pallas_call(
            _make_small_kernel(num_deg),
            out_shape=jax.ShapeDtypeStruct((n, out_size), jnp.float32),
            in_specs=[vmem] * 5,
            out_specs=vmem,
        )(node_repr, summed, onehot, w_self_b, w_deg_b)

    # ---- tiled two-pass path (real graph sizes) ----
    n_tiles = max(pl.cdiv(n, row_tile), 2)   # >=2 parallel tiles so v7x megacore splits rows
    tm = _round_up(pl.cdiv(n, n_tiles), 8)
    n_tiles = pl.cdiv(n, tm)

    row_specs = [
        pl.BlockSpec((tm, node_size), lambda i: (i, 0)),      # streamed rows
        pl.BlockSpec((tm, temp_size), lambda i: (i, 0)),
        pl.BlockSpec((tm, num_deg), lambda i: (i, 0)),
    ]
    w_specs = [
        pl.BlockSpec((node_size, out_size), lambda i: (0, 0)),           # resident weights
        pl.BlockSpec((num_deg, temp_size, out_size), lambda i: (0, 0, 0)),
    ]
    params = pltpu.CompilerParams(dimension_semantics=("parallel",))

    part = pl.pallas_call(
        _make_stats_kernel(num_deg, n),
        out_shape=jax.ShapeDtypeStruct((n_tiles, 2, out_size), jnp.float32),
        grid=(n_tiles,),
        in_specs=row_specs + w_specs,
        out_specs=pl.BlockSpec((None, 2, out_size), lambda i: (i, 0, 0)),
        compiler_params=params,
    )(node_repr, summed, onehot, w_self_b, w_deg_b)

    # Tiny cross-tile reduction + mean / inv_std derivation (O(output_size) work).
    total = jnp.sum(part[:, 0, :], axis=0)
    total_sq = jnp.sum(part[:, 1, :], axis=0)
    mean = total / n
    var = jnp.maximum(total_sq / n - mean * mean, 0.0)
    inv_std = lax.rsqrt(var + BN_EPS)
    stats = jnp.stack([mean, inv_std], axis=0)          # (2, out_size)

    return pl.pallas_call(
        _make_bn_relu_kernel(num_deg),
        out_shape=jax.ShapeDtypeStruct((n, out_size), jnp.float32),
        grid=(n_tiles,),
        in_specs=row_specs + w_specs + [pl.BlockSpec((2, out_size), lambda i: (0, 0))],
        out_specs=pl.BlockSpec((tm, out_size), lambda i: (i, 0)),
        compiler_params=params,
    )(node_repr, summed, onehot, w_self_b, w_deg_b, stats)


# -----------------------------------------------------------------------------
# Glue: ragged per-degree neighbor gather (data-dependent Python-list indexing).
# TODO(synk): no clean Pallas equivalent for the ragged gather/concat; done in JAX.
# -----------------------------------------------------------------------------
def build_degree_inputs(node_repr, edge_repr, neighbor_by_degree, degree_list, temp_size):
    summed_list, onehot_list = [], []
    nd = len(degree_list)
    for d_idx, degree in enumerate(degree_list):
        node_nb = neighbor_by_degree[degree]['node']
        edge_nb = neighbor_by_degree[degree]['edge']
        if not node_nb:
            # PyTorch adds outsider_repr.sum() * 0.0 here — exactly zero, dropped.
            continue
        n_d = len(node_nb)
        if degree == 0:
            s = jnp.zeros((n_d, temp_size), jnp.float32)
        else:
            nn_idx = jnp.asarray(node_nb, jnp.int32)   # [n_d, degree]
            ee_idx = jnp.asarray(edge_nb, jnp.int32)   # [n_d, degree]
            stacked = jnp.concatenate([node_repr[nn_idx], edge_repr[ee_idx]], axis=2)
            s = jnp.sum(stacked, axis=1)
        summed_list.append(s)
        onehot_list.append(jnp.zeros((n_d, nd), jnp.float32).at[:, d_idx].set(1.0))
    return jnp.concatenate(summed_list, axis=0), jnp.concatenate(onehot_list, axis=0)


# -----------------------------------------------------------------------------
# Pure-JAX reference (same bf16-matmul / f32-accumulate precision policy as the
# kernels; keeps a NON-ZERO bias to show it cancels under affine-free BatchNorm).
# -----------------------------------------------------------------------------
def reference(node_repr, summed, onehot, w_self, w_deg, bias):
    node_b = node_repr.astype(jnp.bfloat16)
    summed_b = summed.astype(jnp.bfloat16)
    self_repr = jnp.dot(node_b, w_self.astype(jnp.bfloat16),
                        preferred_element_type=jnp.float32)
    per_deg = jnp.einsum('nt,dto->ndo', summed_b, w_deg.astype(jnp.bfloat16),
                         preferred_element_type=jnp.float32)
    neighbor = jnp.einsum('nd,ndo->no', onehot, per_deg)
    act = self_repr + neighbor + bias
    mean = act.mean(0, keepdims=True)
    var = ((act - mean) ** 2).mean(0, keepdims=True)
    act = (act - mean) / jnp.sqrt(var + BN_EPS)
    return jnp.maximum(act, 0.0)


if __name__ == "__main__":
    # --- module hyper-parameters (consistent with GraphDegreeConv.__init__) ---
    node_size, edge_size, output_size = 16, 8, 32
    degree_list = [0, 1, 2, 3]
    temp_size = node_size + edge_size

    key = jax.random.PRNGKey(0)
    k_node, k_edge, k_wself, k_wdeg, k_bias, k_big1, k_big2, k_big3 = jax.random.split(key, 8)
    w_self = jax.random.normal(k_wself, (node_size, output_size), jnp.float32) * 0.1
    w_deg = jax.random.normal(k_wdeg, (len(degree_list), temp_size, output_size),
                              jnp.float32) * 0.1
    # nn.Parameter bias: non-zero here only to demonstrate exact cancellation under BN.
    bias = jax.random.normal(k_bias, (1, output_size), jnp.float32) * 0.1

    # ---------------- test 1: small graph (single fused VMEM-resident kernel) --------
    counts = {0: 4, 1: 6, 2: 8, 3: 6}
    N, E = sum(counts.values()), 20
    node_repr = jax.random.normal(k_node, (N, node_size), jnp.float32)
    edge_repr = jax.random.normal(k_edge, (E, edge_size), jnp.float32)

    rng = np.random.default_rng(0)
    neighbor_by_degree = {}
    for degree in degree_list:
        n_d = counts[degree]
        if degree == 0:
            node_nb = [[] for _ in range(n_d)]
            edge_nb = [[] for _ in range(n_d)]
        else:
            node_nb = [rng.integers(0, N, size=degree).tolist() for _ in range(n_d)]
            edge_nb = [rng.integers(0, E, size=degree).tolist() for _ in range(n_d)]
        neighbor_by_degree[degree] = {'node': node_nb, 'edge': edge_nb}

    summed, onehot = build_degree_inputs(node_repr, edge_repr, neighbor_by_degree,
                                         degree_list, temp_size)
    ref = reference(node_repr, summed, onehot, w_self, w_deg, bias)

    out = jax.block_until_ready(
        graph_degree_conv(node_repr, summed, onehot, w_self, w_deg))
    np.testing.assert_allclose(np.asarray(out), np.asarray(ref), rtol=2e-3, atol=2e-3)

    # ---- test 1b: same tiny graph forced through the tiled path (exercises tail mask)
    out_t = jax.block_until_ready(
        graph_degree_conv(node_repr, summed, onehot, w_self, w_deg,
                          row_tile=16, small_cutoff=0))
    np.testing.assert_allclose(np.asarray(out_t), np.asarray(ref), rtol=2e-3, atol=2e-3)

    # ---------------- test 2: larger graph (row-tiled two-pass BN path, ragged tail) -
    N_big = 1177
    deg_assign = jax.random.randint(k_big1, (N_big,), 0, len(degree_list))
    onehot_big = jax.nn.one_hot(deg_assign, len(degree_list), dtype=jnp.float32)
    summed_big = (jax.random.normal(k_big2, (N_big, temp_size), jnp.float32)
                  * jnp.where(deg_assign[:, None] == 0, 0.0, 1.0))
    node_big = jax.random.normal(k_big3, (N_big, node_size), jnp.float32)

    out_big = jax.block_until_ready(
        graph_degree_conv(node_big, summed_big, onehot_big, w_self, w_deg))
    ref_big = reference(node_big, summed_big, onehot_big, w_self, w_deg, bias)
    np.testing.assert_allclose(np.asarray(out_big), np.asarray(ref_big),
                               rtol=2e-3, atol=2e-3)

    print("KERNEL_OK")
</pallas_src>

<mosaic_0001>
module attributes {stable_mosaic.version = 11 : i64} {
  func.func @kernel(%arg0: memref<24x16xf32, #tpu.memory_space<vmem>>, %arg1: memref<24x24xf32, #tpu.memory_space<vmem>>, %arg2: memref<24x4xf32, #tpu.memory_space<vmem>>, %arg3: memref<16x32xbf16, #tpu.memory_space<vmem>>, %arg4: memref<4x24x32xbf16, #tpu.memory_space<vmem>>, %arg5: memref<24x32xf32, #tpu.memory_space<vmem>>) attributes {dimension_semantics = [], scalar_prefetch = 0 : i64, scratch_operands = 0 : i64, tpu.core_type = #tpu.core_type<tc>} {
    %c0 = arith.constant 0 : index
    %c0_0 = arith.constant 0 : index
    %0 = vector.load %arg0[%c0, %c0_0] : memref<24x16xf32, #tpu.memory_space<vmem>>, vector<24x16xf32>
    %1 = arith.truncf %0 : vector<24x16xf32> to vector<24x16xbf16>
    %c0_1 = arith.constant 0 : index
    %c0_2 = arith.constant 0 : index
    %2 = vector.load %arg3[%c0_1, %c0_2] : memref<16x32xbf16, #tpu.memory_space<vmem>>, vector<16x32xbf16>
    %cst = arith.constant dense<0.000000e+00> : vector<24x32xf32>
    %3 = tpu.matmul %1, %2, %cst {dimension_numbers = #tpu.dot_dimension_numbers<[1], [0], [0], [1], [0, 0, 1, 1], [], []>} : vector<24x16xbf16>, vector<16x32xbf16>, vector<24x32xf32> -> vector<24x32xf32>
    %c0_3 = arith.constant 0 : index
    %c0_4 = arith.constant 0 : index
    %4 = vector.load %arg1[%c0_3, %c0_4] : memref<24x24xf32, #tpu.memory_space<vmem>>, vector<24x24xf32>
    %5 = arith.truncf %4 : vector<24x24xf32> to vector<24x24xbf16>
    %c0_5 = arith.constant 0 : index
    %c0_6 = arith.constant 0 : index
    %6 = vector.load %arg2[%c0_5, %c0_6] : memref<24x4xf32, #tpu.memory_space<vmem>>, vector<24x4xf32>
    %7 = vector.extract_strided_slice %6 {offsets = [0, 0], sizes = [24, 1], strides = [1, 1]} : vector<24x4xf32> to vector<24x1xf32>
    %c0_7 = arith.constant 0 : index
    %c0_8 = arith.constant 0 : index
    %c0_9 = arith.constant 0 : index
    %8 = vector.load %arg4[%c0_7, %c0_8, %c0_9] : memref<4x24x32xbf16, #tpu.memory_space<vmem>>, vector<1x24x32xbf16>
    %9 = vector.shape_cast %8 : vector<1x24x32xbf16> to vector<24x32xbf16>
    %cst_10 = arith.constant dense<0.000000e+00> : vector<24x32xf32>
    %10 = tpu.matmul %5, %9, %cst_10 {dimension_numbers = #tpu.dot_dimension_numbers<[1], [0], [0], [1], [0, 0, 1, 1], [], []>} : vector<24x24xbf16>, vector<24x32xbf16>, vector<24x32xf32> -> vector<24x32xf32>
    %11 = vector.broadcast %7 : vector<24x1xf32> to vector<24x32xf32>
    %12 = arith.mulf %11, %10 : vector<24x32xf32>
    %13 = arith.addf %3, %12 : vector<24x32xf32>
    %14 = vector.extract_strided_slice %6 {offsets = [0, 1], sizes = [24, 1], strides = [1, 1]} : vector<24x4xf32> to vector<24x1xf32>
    %c1 = arith.constant 1 : index
    %c0_11 = arith.constant 0 : index
    %c0_12 = arith.constant 0 : index
    %15 = vector.load %arg4[%c1, %c0_11, %c0_12] : memref<4x24x32xbf16, #tpu.memory_space<vmem>>, vector<1x24x32xbf16>
    %16 = vector.shape_cast %15 : vector<1x24x32xbf16> to vector<24x32xbf16>
    %cst_13 = arith.constant dense<0.000000e+00> : vector<24x32xf32>
    %17 = tpu.matmul %5, %16, %cst_13 {dimension_numbers = #tpu.dot_dimension_numbers<[1], [0], [0], [1], [0, 0, 1, 1], [], []>} : vector<24x24xbf16>, vector<24x32xbf16>, vector<24x32xf32> -> vector<24x32xf32>
    %18 = vector.broadcast %14 : vector<24x1xf32> to vector<24x32xf32>
    %19 = arith.mulf %18, %17 : vector<24x32xf32>
    %20 = arith.addf %13, %19 : vector<24x32xf32>
    %21 = vector.extract_strided_slice %6 {offsets = [0, 2], sizes = [24, 1], strides = [1, 1]} : vector<24x4xf32> to vector<24x1xf32>
    %c2 = arith.constant 2 : index
    %c0_14 = arith.constant 0 : index
    %c0_15 = arith.constant 0 : index
    %22 = vector.load %arg4[%c2, %c0_14, %c0_15] : memref<4x24x32xbf16, #tpu.memory_space<vmem>>, vector<1x24x32xbf16>
    %23 = vector.shape_cast %22 : vector<1x24x32xbf16> to vector<24x32xbf16>
    %cst_16 = arith.constant dense<0.000000e+00> : vector<24x32xf32>
    %24 = tpu.matmul %5, %23, %cst_16 {dimension_numbers = #tpu.dot_dimension_numbers<[1], [0], [0], [1], [0, 0, 1, 1], [], []>} : vector<24x24xbf16>, vector<24x32xbf16>, vector<24x32xf32> -> vector<24x32xf32>
    %25 = vector.broadcast %21 : vector<24x1xf32> to vector<24x32xf32>
    %26 = arith.mulf %25, %24 : vector<24x32xf32>
    %27 = arith.addf %20, %26 : vector<24x32xf32>
    %28 = vector.extract_strided_slice %6 {offsets = [0, 3], sizes = [24, 1], strides = [1, 1]} : vector<24x4xf32> to vector<24x1xf32>
    %c3 = arith.constant 3 : index
    %c0_17 = arith.constant 0 : index
    %c0_18 = arith.constant 0 : index
    %29 = vector.load %arg4[%c3, %c0_17, %c0_18] : memref<4x24x32xbf16, #tpu.memory_space<vmem>>, vector<1x24x32xbf16>
    %30 = vector.shape_cast %29 : vector<1x24x32xbf16> to vector<24x32xbf16>
    %cst_19 = arith.constant dense<0.000000e+00> : vector<24x32xf32>
    %31 = tpu.matmul %5, %30, %cst_19 {dimension_numbers = #tpu.dot_dimension_numbers<[1], [0], [0], [1], [0, 0, 1, 1], [], []>} : vector<24x24xbf16>, vector<24x32xbf16>, vector<24x32xf32> -> vector<24x32xf32>
    %32 = vector.broadcast %28 : vector<24x1xf32> to vector<24x32xf32>
    %33 = arith.mulf %32, %31 : vector<24x32xf32>
    %34 = arith.addf %27, %33 : vector<24x32xf32>
    %cst_20 = arith.constant dense<0.000000e+00> : vector<32xf32>
    %35 = vector.multi_reduction <add>, %34, %cst_20 [0] : vector<24x32xf32> to vector<32xf32>
    %36 = vector.shape_cast %35 : vector<32xf32> to vector<1x32xf32>
    %37 = arith.mulf %34, %34 : vector<24x32xf32>
    %cst_21 = arith.constant dense<0.000000e+00> : vector<32xf32>
    %38 = vector.multi_reduction <add>, %37, %cst_21 [0] : vector<24x32xf32> to vector<32xf32>
    %39 = vector.shape_cast %38 : vector<32xf32> to vector<1x32xf32>
    %cst_22 = arith.constant 0.0416666679 : f32
    %40 = vector.broadcast %cst_22 : f32 to vector<1x32xf32>
    %41 = arith.mulf %36, %40 : vector<1x32xf32>
    %cst_23 = arith.constant 0.0416666679 : f32
    %42 = vector.broadcast %cst_23 : f32 to vector<1x32xf32>
    %43 = arith.mulf %39, %42 : vector<1x32xf32>
    %44 = arith.mulf %41, %41 : vector<1x32xf32>
    %45 = arith.subf %43, %44 : vector<1x32xf32>
    %cst_24 = arith.constant 0.000000e+00 : f32
    %46 = vector.broadcast %cst_24 : f32 to vector<1x32xf32>
    %47 = arith.maximumf %45, %46 : vector<1x32xf32>
    %48 = vector.broadcast %41 : vector<1x32xf32> to vector<24x32xf32>
    %49 = arith.subf %34, %48 : vector<24x32xf32>
    %cst_25 = arith.constant 9.99999974E-6 : f32
    %50 = vector.broadcast %cst_25 : f32 to vector<1x32xf32>
    %51 = arith.addf %47, %50 : vector<1x32xf32>
    %52 = math.rsqrt %51 : vector<1x32xf32>
    %53 = vector.broadcast %52 : vector<1x32xf32> to vector<24x32xf32>
    %54 = arith.mulf %49, %53 : vector<24x32xf32>
    %cst_26 = arith.constant 0.000000e+00 : f32
    %55 = vector.broadcast %cst_26 : f32 to vector<24x32xf32>
    %56 = arith.maximumf %54, %55 : vector<24x32xf32>
    %c0_27 = arith.constant 0 : index
    %c0_28 = arith.constant 0 : index
    %57 = vector.load %arg5[%c0_27, %c0_28] : memref<24x32xf32, #tpu.memory_space<vmem>>, vector<24x32xf32>
    tpu.vector_store %arg5[%c0_27, %c0_28], %56 {strides = array<i32>} : memref<24x32xf32, #tpu.memory_space<vmem>>, vector<24x32xf32>,
    return
  }
}

</mosaic_0001>

<llo_original>
// kernel: tpu_custom_call.1
$region0: #{tpu_custom_call.1}
  #allocation0 [shape = 'u32[]', space=smem, size = 0x4, offset = 0x4, fixed_abs, tag = 'smem constant byte address 0x4 - core index']
  #allocation1 [shape = 'u32[144,128]{1,0:T(1,128)}', space=vmem, size = 0x12000, scoped, tag = 'internal scratch']
  %s0 = inlined_call_operand.vmem [shape: f32[24,16], index: 0, kind: input, shape index: {}]
  %s1 = inlined_call_operand.vmem [shape: f32[24,24], index: 1, kind: input, shape index: {}]
  %s2 = inlined_call_operand.vmem [shape: f32[24,4], index: 2, kind: input, shape index: {}]
  %s3 = inlined_call_operand.hbm [shape: bf16[16,32], index: 3, kind: input, shape index: {}]
  %s4 = inlined_call_operand.vmem [shape: bf16[4,24,32], index: 4, kind: input, shape index: {}]
  %s5 = inlined_call_operand.hbm [shape: f32[24,32], index: 5, kind: output, shape index: {}]
  %s6 = sld [smem:[#allocation0]]
  $region34: #{tpu_custom_call.1} parent=0
    _
  %s8 = ssub.s32 1, %s6
  %s9 = scalar_select 0, %s8, %s6
  $region1: #{tpu_custom_call.1} parent=0
    #allocation2 [shape = 'u8[4096]{0}', space=vmem, size = 0x1000, scoped, tag = 'input window, operand 3, single buffered']
    #allocation3 [shape = 's32[1]{0}', space=sflag, size = 0x4, scoped, tag = 'scoped memory for tpu_custom_call.1']
    #allocation4 [shape = 's32[1]{0}', space=sflag, size = 0x4, scoped, tag = 'scoped memory for tpu_custom_call.1']
    #allocation5 [shape = 'u8[12288]{0}', space=vmem, size = 0x3000, scoped, tag = 'output window, operand 0, single buffered']
    %10 = vsyncpa [#allocation3], 0
    %11 = vsyncpa [#allocation4], 0
    // Predicated region
    $region2: #{tpu_custom_call.1} parent=1 // pred_check
      _
    $region3: #{tpu_custom_call.1} parent=1 // pred_check_branch
      %13 = sbr.rel (0) target = $region5
    $region4: #{tpu_custom_call.1} parent=1 // pred_region
      _
    $region5: #{tpu_custom_call.1} parent=1 // pred_fallthru
      _
    // Predicated region
    $region6: #{tpu_custom_call.1} parent=1 // pred_check
      _
    $region7: #{tpu_custom_call.1} parent=1 // pred_check_branch
      %15 = sbr.rel (0) target = $region9
    $region8: #{tpu_custom_call.1} parent=1 // pred_region
      _
    $region9: #{tpu_custom_call.1} parent=1 // pred_fallthru
      _
    // Predicated region
    $region10: #{tpu_custom_call.1} parent=1 // pred_check
      _
    $region11: #{tpu_custom_call.1} parent=1 // pred_check_branch
      %17 = sbr.rel (0) target = $region13
    $region12: #{tpu_custom_call.1} parent=1 // pred_region
      _
    $region13: #{tpu_custom_call.1} parent=1 // pred_fallthru
      _
    // Predicated region
    $region14: #{tpu_custom_call.1} parent=1 // pred_check
      _
    $region15: #{tpu_custom_call.1} parent=1 // pred_check_branch
      %19 = sbr.rel (0) target = $region17
    $region16: #{tpu_custom_call.1} parent=1 // pred_region
      %s21 = ssub.s32 128, 128
      %22 = vsyncadd [#allocation3], %s21
      %s23 = sshll.u32 [#allocation2], 4
      %s24 = int_to_ptr.vmem [resolvable:$true] %s23
      %29 = dma.hbm_to_vmem [thread:$0]  %s3, 128, %s24, [#allocation3], 64, 64, 4
    $region17: #{tpu_custom_call.1} parent=1 // pred_fallthru
      _
    // Predicated region
    $region18: #{tpu_custom_call.1} parent=1 // pred_check
      _
    $region19: #{tpu_custom_call.1} parent=1 // pred_check_branch
      %31 = sbr.rel (0) target = $region21
    $region20: #{tpu_custom_call.1} parent=1 // pred_region
      _
    $region21: #{tpu_custom_call.1} parent=1 // pred_fallthru
      _
    // Predicated region
    $region22: #{tpu_custom_call.1} parent=1 // pred_check
      _
    $region23: #{tpu_custom_call.1} parent=1 // pred_check_branch
      %33 = sbr.rel (0) target = $region25
    $region24: #{tpu_custom_call.1} parent=1 // pred_region
      %34 = dma.done [#allocation3], 128
    $region25: #{tpu_custom_call.1} parent=1 // pred_fallthru
      _
    %v36 = vld [vmem:[%s0] sm:$0xff]
    %v37 = vld [vmem:[%s0 + $0x8] sm:$0xff]
    %v38 = vld [vmem:[%s0 + $0x10] sm:$0xff]
    %v39 = vpack.c.bf16 %v37, %v36
    %v40 = vpack.c.bf16 %v38, %v38
    %v41 = vld [vmem:[#allocation2] sm:$0xf]
    %v42 = vld [vmem:[#allocation2 + $0x4] sm:$0xf]
    %v43 = vld [vmem:[%s1] sm:$0xff]
    %v44 = vld [vmem:[%s1 + $0x8] sm:$0xff]
    %v45 = vld [vmem:[%s1 + $0x10] sm:$0xff]
    %v46 = vpack.c.bf16 %v44, %v43
    %v47 = vpack.c.bf16 %v45, %v45
    %v48 = vld [vmem:[%s2] sm:$0xff]
    %v49 = vld [vmem:[%s2 + $0x8] sm:$0xff]
    %v50 = vld [vmem:[%s2 + $0x10] sm:$0xff]
    %v51 = vld [vmem:[%s4] sm:$0xf]
    %v52 = vld [vmem:[%s4 + $0x4] sm:$0xf]
    %v53 = vld [vmem:[%s4 + $0x8] sm:$0xf]
    %v57 = vunpack.c.l.b16 %v51
    %v58 = vunpack.c.l.b16 %v52
    %v59 = vunpack.c.l.b16 %v53
    %v60 = vpack.c.b16 %v58, %v57
    %v61 = vpack.c.b16 %v59, %v59
    %vm63 = vcmask 195584
    %v65 = vsel %vm63, %v46, 0
    %v68 = vsel %vm63, %v47, 0
    %vm70 = vcmask 1043456
    %v72 = vsel %vm70, %v61, 0
    %74 = vmatprep.subr.bf16.mxu0 0
    %75 = vmatpush1.bf16.msra.mxu0 0
    %76 = vmatprep.subr.bf16.mxu0 0
    %77 = vmatpush1.bf16.msra.mxu0 0
    %78 = vmatprep.subr.bf16.mxu0 0
    %79 = vmatpush1.bf16.msra.mxu0 0
    %80 = vmatprep.subr.bf16.mxu0 0
    %81 = vmatpush1.bf16.msra.mxu0 0
    %82 = vmatprep.subr.bf16.mxu0 0
    %83 = vmatpush1.bf16.msra.mxu0 0
    %84 = vmatprep.subr.bf16.mxu0 0
    %85 = vmatpush1.bf16.msra.mxu0 0
    %86 = vmatprep.subr.bf16.mxu0 0
    %87 = vmatpush1.bf16.msra.mxu0 %v72
    %88 = vmatprep.subr.bf16.mxu0 0
    %89 = vmatpush1.bf16.msra.mxu0 %v60
    %90 = vmatprep.subr.bf16.mxu0 0
    %91 = vmatpush2.bf16.msra.mxu0 0
    %92 = vmatprep.subr.bf16.mxu0 0
    %93 = vmatpush2.bf16.msra.mxu0 0
    %94 = vmatprep.subr.bf16.mxu0 0
    %95 = vmatpush2.bf16.msra.mxu0 0
    %96 = vmatprep.subr.bf16.mxu0 0
    %97 = vmatpush2.bf16.msra.mxu0 0
    %98 = vmatprep.subr.bf16.mxu0 0
    %99 = vmatpush2.bf16.msra.mxu0 0
    %100 = vmatprep.subr.bf16.mxu0 0
    %101 = vmatpush2.bf16.msra.mxu0 0
    %102 = vmatprep.subr.bf16.mxu0 0
    %103 = vmatpush2.bf16.msra.mxu0 0
    %104 = vmatprep.subr.bf16.mxu0 0
    %105 = vmatpush2.bf16.msra.mxu0 0
    %106 = vmatprep.mubr.bf16.mxu0 0
    %107 = vmatmul.mubr.bf16.gmra.mxu0 %v65
    %v108 = vpop.f32.mrf.mxu0
    %v109 = vadd.f32 0.0, %v108
    %v110 = vpop.f32.mrf.mxu0
    %v111 = vpop.f32.mrf.mxu0
    %v112 = vadd.f32 0.0, %v111
    %v113 = vpop.f32.mrf.mxu0
    %114 = vmatprep.mubr.bf16.mxu0 0
    %115 = vmatmul.mubr.bf16.gmra.mxu0 %v68
    %v116 = vpop.f32.mrf.mxu0
    %v117 = vadd.f32 0.0, %v116
    %v118 = vpop.f32.mrf.mxu0
    %v119 = vpop.f32.mrf.mxu0
    %v120 = vpop.f32.mrf.mxu0
    %121 = vdwg.mxu0
    %123 = vset.pattern.permute.xlu0 0
    %124 = vperm.xlu0 %123, %v48
    %v125 = vpop.permute.xlu0 %124
    %128 = vset.pattern.permute.xlu0 0
    %129 = vperm.xlu0 %128, %v49
    %v130 = vpop.permute.xlu0 %129
    %133 = vset.pattern.permute.xlu0 0
    %134 = vperm.xlu0 %133, %v50
    %v135 = vpop.permute.xlu0 %134
    %v137 = vmul.f32 %v125, %v109
    %v138 = vmul.f32 %v130, %v112
    %v139 = vmul.f32 %v135, %v117
    %v142 = vunpack.c.l.b16 %v41
    %v143 = vunpack.c.l.b16 %v42
    %v144 = vpack.c.b16 %v143, %v142
    %vm146 = vcmask 130048
    %v148 = vsel %vm146, %v39, 0
    %v151 = vsel %vm146, %v40, 0
    %153 = vmatprep.subr.bf16.mxu0 0
    %154 = vmatpush1.bf16.msra.mxu0 0
    %155 = vmatprep.subr.bf16.mxu0 0
    %156 = vmatpush1.bf16.msra.mxu0 0
    %157 = vmatprep.subr.bf16.mxu0 0
    %158 = vmatpush1.bf16.msra.mxu0 0
    %159 = vmatprep.subr.bf16.mxu0 0
    %160 = vmatpush1.bf16.msra.mxu0 0
    %161 = vmatprep.subr.bf16.mxu0 0
    %162 = vmatpush1.bf16.msra.mxu0 0
    %163 = vmatprep.subr.bf16.mxu0 0
    %164 = vmatpush1.bf16.msra.mxu0 0
    %165 = vmatprep.subr.bf16.mxu0 0
    %166 = vmatpush1.bf16.msra.mxu0 0
    %167 = vmatprep.subr.bf16.mxu0 0
    %168 = vmatpush1.bf16.msra.mxu0 %v144
    %169 = vmatprep.subr.bf16.mxu0 0
    %170 = vmatpush2.bf16.msra.mxu0 0
    %171 = vmatprep.subr.bf16.mxu0 0
    %172 = vmatpush2.bf16.msra.mxu0 0
    %173 = vmatprep.subr.bf16.mxu0 0
    %174 = vmatpush2.bf16.msra.mxu0 0
    %175 = vmatprep.subr.bf16.mxu0 0
    %176 = vmatpush2.bf16.msra.mxu0 0
    %177 = vmatprep.subr.bf16.mxu0 0
    %178 = vmatpush2.bf16.msra.mxu0 0
    %179 = vmatprep.subr.bf16.mxu0 0
    %180 = vmatpush2.bf16.msra.mxu0 0
    %181 = vmatprep.subr.bf16.mxu0 0
    %182 = vmatpush2.bf16.msra.mxu0 0
    %183 = vmatprep.subr.bf16.mxu0 0
    %184 = vmatpush2.bf16.msra.mxu0 0
    %185 = vmatprep.mubr.bf16.mxu0 0
    %186 = vmatmul.mubr.bf16.gmra.mxu0 %v148
    %v187 = vpop.f32.mrf.mxu0
    %v188 = vadd.f32 %v137, %v187
    %v189 = vpop.f32.mrf.mxu0
    %v190 = vpop.f32.mrf.mxu0
    %v191 = vadd.f32 %v138, %v190
    %v192 = vpop.f32.mrf.mxu0
    %193 = vmatprep.mubr.bf16.mxu0 0
    %194 = vmatmul.mubr.bf16.gmra.mxu0 %v151
    %v195 = vpop.f32.mrf.mxu0
    %v196 = vadd.f32 %v139, %v195
    %v197 = vpop.f32.mrf.mxu0
    %v198 = vpop.f32.mrf.mxu0
    %v199 = vpop.f32.mrf.mxu0
    %200 = vdwg.mxu0
    %s201 = scalar_lea.vmem %s4, 12
    %v202 = vld [vmem:[%s201] sm:$0xf]
    %v203 = vld [vmem:[%s201 + $0x4] sm:$0xf]
    %v204 = vld [vmem:[%s201 + $0x8] sm:$0xf]
    %v208 = vunpack.c.l.b16 %v202
    %v209 = vunpack.c.l.b16 %v203
    %v210 = vunpack.c.l.b16 %v204
    %v211 = vpack.c.b16 %v209, %v208
    %v212 = vpack.c.b16 %v210, %v210
    %v215 = vsel %vm70, %v212, 0
    %217 = vmatprep.subr.bf16.mxu0 0
    %218 = vmatpush1.bf16.msra.mxu0 0
    %219 = vmatprep.subr.bf16.mxu0 0
    %220 = vmatpush1.bf16.msra.mxu0 0
    %221 = vmatprep.subr.bf16.mxu0 0
    %222 = vmatpush1.bf16.msra.mxu0 0
    %223 = vmatprep.subr.bf16.mxu0 0
    %224 = vmatpush1.bf16.msra.mxu0 0
    %225 = vmatprep.subr.bf16.mxu0 0
    %226 = vmatpush1.bf16.msra.mxu0 0
    %227 = vmatprep.subr.bf16.mxu0 0
    %228 = vmatpush1.bf16.msra.mxu0 0
    %229 = vmatprep.subr.bf16.mxu0 0
    %230 = vmatpush1.bf16.msra.mxu0 %v215
    %231 = vmatprep.subr.bf16.mxu0 0
    %232 = vmatpush1.bf16.msra.mxu0 %v211
    %233 = vmatprep.subr.bf16.mxu0 0
    %234 = vmatpush2.bf16.msra.mxu0 0
    %235 = vmatprep.subr.bf16.mxu0 0
    %236 = vmatpush2.bf16.msra.mxu0 0
    %237 = vmatprep.subr.bf16.mxu0 0
    %238 = vmatpush2.bf16.msra.mxu0 0
    %239 = vmatprep.subr.bf16.mxu0 0
    %240 = vmatpush2.bf16.msra.mxu0 0
    %241 = vmatprep.subr.bf16.mxu0 0
    %242 = vmatpush2.bf16.msra.mxu0 0
    %243 = vmatprep.subr.bf16.mxu0 0
    %244 = vmatpush2.bf16.msra.mxu0 0
    %245 = vmatprep.subr.bf16.mxu0 0
    %246 = vmatpush2.bf16.msra.mxu0 0
    %247 = vmatprep.subr.bf16.mxu0 0
    %248 = vmatpush2.bf16.msra.mxu0 0
    %249 = vmatprep.mubr.bf16.mxu0 0
    %250 = vmatmul.mubr.bf16.gmra.mxu0 %v65
    %v251 = vpop.f32.mrf.mxu0
    %v252 = vadd.f32 0.0, %v251
    %v253 = vpop.f32.mrf.mxu0
    %v254 = vpop.f32.mrf.mxu0
    %v255 = vadd.f32 0.0, %v254
    %v256 = vpop.f32.mrf.mxu0
    %257 = vmatprep.mubr.bf16.mxu0 0
    %258 = vmatmul.mubr.bf16.gmra.mxu0 %v68
    %v259 = vpop.f32.mrf.mxu0
    %v260 = vadd.f32 0.0, %v259
    %v261 = vpop.f32.mrf.mxu0
    %v262 = vpop.f32.mrf.mxu0
    %v263 = vpop.f32.mrf.mxu0
    %264 = vdwg.mxu0
    %265 = vset.pattern.permute.xlu0 1
    %266 = vperm.xlu0 %265, %v48
    %v267 = vpop.permute.xlu0 %266
    %269 = vset.pattern.permute.xlu0 1
    %270 = vperm.xlu0 %269, %v49
    %v271 = vpop.permute.xlu0 %270
    %273 = vset.pattern.permute.xlu0 1
    %274 = vperm.xlu0 %273, %v50
    %v275 = vpop.permute.xlu0 %274
    %v277 = vmul.f32 %v267, %v252
    %v278 = vmul.f32 %v271, %v255
    %v279 = vmul.f32 %v275, %v260
    %v280 = vadd.f32 %v188, %v277
    %v281 = vadd.f32 %v191, %v278
    %v282 = vadd.f32 %v196, %v279
    %s283 = scalar_lea.vmem %s4, 24
    %v284 = vld [vmem:[%s283] sm:$0xf]
    %v285 = vld [vmem:[%s283 + $0x4] sm:$0xf]
    %v286 = vld [vmem:[%s283 + $0x8] sm:$0xf]
    %v290 = vunpack.c.l.b16 %v284
    %v291 = vunpack.c.l.b16 %v285
    %v292 = vunpack.c.l.b16 %v286
    %v293 = vpack.c.b16 %v291, %v290
    %v294 = vpack.c.b16 %v292, %v292
    %v297 = vsel %vm70, %v294, 0
    %299 = vmatprep.subr.bf16.mxu0 0
    %300 = vmatpush1.bf16.msra.mxu0 0
    %301 = vmatprep.subr.bf16.mxu0 0
    %302 = vmatpush1.bf16.msra.mxu0 0
    %303 = vmatprep.subr.bf16.mxu0 0
    %304 = vmatpush1.bf16.msra.mxu0 0
    %305 = vmatprep.subr.bf16.mxu0 0
    %306 = vmatpush1.bf16.msra.mxu0 0
    %307 = vmatprep.subr.bf16.mxu0 0
    %308 = vmatpush1.bf16.msra.mxu0 0
    %309 = vmatprep.subr.bf16.mxu0 0
    %310 = vmatpush1.bf16.msra.mxu0 0
    %311 = vmatprep.subr.bf16.mxu0 0
    %312 = vmatpush1.bf16.msra.mxu0 %v297
    %313 = vmatprep.subr.bf16.mxu0 0
    %314 = vmatpush1.bf16.msra.mxu0 %v293
    %315 = vmatprep.subr.bf16.mxu0 0
    %316 = vmatpush2.bf16.msra.mxu0 0
    %317 = vmatprep.subr.bf16.mxu0 0
    %318 = vmatpush2.bf16.msra.mxu0 0
    %319 = vmatprep.subr.bf16.mxu0 0
    %320 = vmatpush2.bf16.msra.mxu0 0
    %321 = vmatprep.subr.bf16.mxu0 0
    %322 = vmatpush2.bf16.msra.mxu0 0
    %323 = vmatprep.subr.bf16.mxu0 0
    %324 = vmatpush2.bf16.msra.mxu0 0
    %325 = vmatprep.subr.bf16.mxu0 0
    %326 = vmatpush2.bf16.msra.mxu0 0
    %327 = vmatprep.subr.bf16.mxu0 0
    %328 = vmatpush2.bf16.msra.mxu0 0
    %329 = vmatprep.subr.bf16.mxu0 0
    %330 = vmatpush2.bf16.msra.mxu0 0
    %331 = vmatprep.mubr.bf16.mxu0 0
    %332 = vmatmul.mubr.bf16.gmra.mxu0 %v65
    %v333 = vpop.f32.mrf.mxu0
    %v334 = vadd.f32 0.0, %v333
    %v335 = vpop.f32.mrf.mxu0
    %v336 = vpop.f32.mrf.mxu0
    %v337 = vadd.f32 0.0, %v336
    %v338 = vpop.f32.mrf.mxu0
    %339 = vmatprep.mubr.bf16.mxu0 0
    %340 = vmatmul.mubr.bf16.gmra.mxu0 %v68
    %v341 = vpop.f32.mrf.mxu0
    %v342 = vadd.f32 0.0, %v341
    %v343 = vpop.f32.mrf.mxu0
    %v344 = vpop.f32.mrf.mxu0
    %v345 = vpop.f32.mrf.mxu0
    %346 = vdwg.mxu0
    %347 = vset.pattern.permute.xlu0 2
    %348 = vperm.xlu0 %347, %v48
    %v349 = vpop.permute.xlu0 %348
    %351 = vset.pattern.permute.xlu0 2
    %352 = vperm.xlu0 %351, %v49
    %v353 = vpop.permute.xlu0 %352
    %355 = vset.pattern.permute.xlu0 2
    %356 = vperm.xlu0 %355, %v50
    %v357 = vpop.permute.xlu0 %356
    %v359 = vmul.f32 %v349, %v334
    %v360 = vmul.f32 %v353, %v337
    %v361 = vmul.f32 %v357, %v342
    %v362 = vadd.f32 %v280, %v359
    %v363 = vadd.f32 %v281, %v360
    %v364 = vadd.f32 %v282, %v361
    %s365 = scalar_lea.vmem %s4, 36
    %v366 = vld [vmem:[%s365] sm:$0xf]
    %v367 = vld [vmem:[%s365 + $0x4] sm:$0xf]
    %v368 = vld [vmem:[%s365 + $0x8] sm:$0xf]
    %v372 = vunpack.c.l.b16 %v366
    %v373 = vunpack.c.l.b16 %v367
    %v374 = vunpack.c.l.b16 %v368
    %v375 = vpack.c.b16 %v373, %v372
    %v376 = vpack.c.b16 %v374, %v374
    %v379 = vsel %vm70, %v376, 0
    %381 = vmatprep.subr.bf16.mxu0 0
    %382 = vmatpush1.bf16.msra.mxu0 0
    %383 = vmatprep.subr.bf16.mxu0 0
    %384 = vmatpush1.bf16.msra.mxu0 0
    %385 = vmatprep.subr.bf16.mxu0 0
    %386 = vmatpush1.bf16.msra.mxu0 0
    %387 = vmatprep.subr.bf16.mxu0 0
    %388 = vmatpush1.bf16.msra.mxu0 0
    %389 = vmatprep.subr.bf16.mxu0 0
    %390 = vmatpush1.bf16.msra.mxu0 0
    %391 = vmatprep.subr.bf16.mxu0 0
    %392 = vmatpush1.bf16.msra.mxu0 0
    %393 = vmatprep.subr.bf16.mxu0 0
    %394 = vmatpush1.bf16.msra.mxu0 %v379
    %395 = vmatprep.subr.bf16.mxu0 0
    %396 = vmatpush1.bf16.msra.mxu0 %v375
    %397 = vmatprep.subr.bf16.mxu0 0
    %398 = vmatpush2.bf16.msra.mxu0 0
    %399 = vmatprep.subr.bf16.mxu0 0
    %400 = vmatpush2.bf16.msra.mxu0 0
    %401 = vmatprep.subr.bf16.mxu0 0
    %402 = vmatpush2.bf16.msra.mxu0 0
    %403 = vmatprep.subr.bf16.mxu0 0
    %404 = vmatpush2.bf16.msra.mxu0 0
    %405 = vmatprep.subr.bf16.mxu0 0
    %406 = vmatpush2.bf16.msra.mxu0 0
    %407 = vmatprep.subr.bf16.mxu0 0
    %408 = vmatpush2.bf16.msra.mxu0 0
    %409 = vmatprep.subr.bf16.mxu0 0
    %410 = vmatpush2.bf16.msra.mxu0 0
    %411 = vmatprep.subr.bf16.mxu0 0
    %412 = vmatpush2.bf16.msra.mxu0 0
    %413 = vmatprep.mubr.bf16.mxu0 0
    %414 = vmatmul.mubr.bf16.gmra.mxu0 %v65
    %v415 = vpop.f32.mrf.mxu0
    %v416 = vadd.f32 0.0, %v415
    %v417 = vpop.f32.mrf.mxu0
    %v418 = vpop.f32.mrf.mxu0
    %v419 = vadd.f32 0.0, %v418
    %v420 = vpop.f32.mrf.mxu0
    %421 = vmatprep.mubr.bf16.mxu0 0
    %422 = vmatmul.mubr.bf16.gmra.mxu0 %v68
    %v423 = vpop.f32.mrf.mxu0
    %v424 = vadd.f32 0.0, %v423
    %v425 = vpop.f32.mrf.mxu0
    %v426 = vpop.f32.mrf.mxu0
    %v427 = vpop.f32.mrf.mxu0
    %428 = vdwg.mxu0
    %429 = vset.pattern.permute.xlu0 3
    %430 = vperm.xlu0 %429, %v48
    %v431 = vpop.permute.xlu0 %430
    %433 = vset.pattern.permute.xlu0 3
    %434 = vperm.xlu0 %433, %v49
    %v435 = vpop.permute.xlu0 %434
    %437 = vset.pattern.permute.xlu0 3
    %438 = vperm.xlu0 %437, %v50
    %v439 = vpop.permute.xlu0 %438
    %v441 = vmul.f32 %v431, %v416
    %v442 = vmul.f32 %v435, %v419
    %v443 = vmul.f32 %v439, %v424
    %v444 = vadd.f32 %v362, %v441
    %v445 = vadd.f32 %v363, %v442
    %v446 = vadd.f32 %v364, %v443
    %vm447 = vcmask 261120
    %v448 = vsel %vm447, %v444, 0.0
    %v449 = vsel %vm447, %v445, 0.0
    %v450 = vadd.f32 %v448, %v449
    %v451 = vsel %vm447, %v446, 0.0
    %v452 = vadd.f32 %v450, %v451
    %v453 = vrot.slane %v452, 4
    %v454 = vadd.f32 %v452, %v453
    %v455 = vrot.slane %v454, 2
    %v456 = vadd.f32 %v454, %v455
    %v457 = vrot.slane %v456, 1
    %v458 = vadd.f32 %v456, %v457
    %v459 = vmul.f32 %v444, %v444
    %v460 = vmul.f32 %v445, %v445
    %v461 = vmul.f32 %v446, %v446
    %v462 = vsel %vm447, %v459, 0.0
    %v463 = vsel %vm447, %v460, 0.0
    %v464 = vadd.f32 %v462, %v463
    %v465 = vsel %vm447, %v461, 0.0
    %v466 = vadd.f32 %v464, %v465
    %v467 = vrot.slane %v466, 4
    %v468 = vadd.f32 %v466, %v467
    %v469 = vrot.slane %v468, 2
    %v470 = vadd.f32 %v468, %v469
    %v471 = vrot.slane %v470, 1
    %v472 = vadd.f32 %v470, %v471
    %v473 = vmul.f32 %v458, 0.041666668
    %v474 = vmul.f32 %v472, 0.041666668
    %v475 = vmul.f32 %v473, %v473
    %v476 = vsub.f32 %v474, %v475
    %v477 = vmax.f32 %v476, 0.0
    %v478 = vsub.f32 %v444, %v473
    %v479 = vsub.f32 %v445, %v473
    %v480 = vsub.f32 %v446, %v473
    %v481 = vadd.f32 %v477, 1e-05
    %v482 = vrsqrt.pop %v481
    %v483 = vmul.f32 %v478, %v482
    %v484 = vmul.f32 %v479, %v482
    %v485 = vmul.f32 %v480, %v482
    %v486 = vmax.f32 %v483, 0.0
    %v487 = vmax.f32 %v484, 0.0
    %v488 = vmax.f32 %v485, 0.0
    %489 = vst.msk [vmem:[#allocation5] sm:$0xff] %vm447, %v486
    %490 = vst.msk [vmem:[#allocation5 + $0x8] sm:$0xff] %vm447, %v487
    %491 = vst.msk [vmem:[#allocation5 + $0x10] sm:$0xff] %vm447, %v488
    // Predicated region
    $region26: #{tpu_custom_call.1} parent=1 // pred_check
      _
    $region27: #{tpu_custom_call.1} parent=1 // pred_check_branch
      %493 = sbr.rel (0) target = $region29
    $region28: #{tpu_custom_call.1} parent=1 // pred_region
      %s495 = ssub.s32 384, 384
      %496 = vsyncadd [#allocation4], %s495
      %s497 = sshll.u32 [#allocation5], 4
      %s498 = int_to_ptr.vmem [resolvable:$true] %s497
      %503 = dma.vmem_to_hbm [thread:$0]  %s498, 384, %s5, [#allocation4], 128, 128, 8
    $region29: #{tpu_custom_call.1} parent=1 // pred_fallthru
      _
    // Predicated region
    $region30: #{tpu_custom_call.1} parent=1 // pred_check
      _
    $region31: #{tpu_custom_call.1} parent=1 // pred_check_branch
      %505 = sbr.rel (0) target = $region33
    $region32: #{tpu_custom_call.1} parent=1 // pred_region
      %506 = dma.done [#allocation4], 384
    $region33: #{tpu_custom_call.1} parent=1 // pred_fallthru
      _
    %507 = vsyncpa [#allocation3], 1
    %508 = vsyncpa [#allocation4], 1

</llo_original>
